<compile_context>
chip_gen: v6e
topology: v6e:2x2x1
jax: 0.10.0
libtpu: 0.0.40
codegen_flags: <defaults>
</compile_context>

<pallas_src>
import functools

import jax
import jax.numpy as jnp
from jax.experimental import pallas as pl
from jax.experimental.pallas import tpu as pltpu


def _round_up(x, m):
    return ((x + m - 1) // m) * m


def _cond_decoder_kernel(x_ref, wcat_ref, w2_ref, b2_ref, o_ref):
    """One batch tile: out = ReLU(x_cat @ W_cat) @ W2 + b2 (f32 accumulation)."""
    h = jnp.dot(x_ref[...], wcat_ref[...], preferred_element_type=jnp.float32)
    h = jnp.maximum(h, 0.0)                                   # ReLU (b1 folded)
    out = (jnp.dot(h.astype(w2_ref.dtype), w2_ref[...],
                   preferred_element_type=jnp.float32)
           + b2_ref[...])                                     # (1,Dout) broadcast
    o_ref[...] = out.astype(o_ref.dtype)                      # lane-dense store


@functools.partial(jax.jit,
                   static_argnames=("block_b", "compute_dtype", "out_dtype"))
def conditional_decoder(z, x_cond, params, *, block_b=None,
                        compute_dtype=jnp.bfloat16, out_dtype=jnp.float32):
    """z: [B, Dz] f32, x_cond: [B] int -> [B, Dout] out_dtype."""
    emb_tbl, w1, b1, w2, b2 = (params["emb"], params["w1"], params["b1"],
                               params["w2"], params["b2"])
    B, Dz = z.shape
    N, _De = emb_tbl.shape
    H = w1.shape[1]
    Dout = w2.shape[1]
    f32 = jnp.float32

    # --- Batch tile sizing --------------------------------------------------
    if block_b is None:
        b8 = _round_up(B, 8)
        if b8 <= 256:
            block_b = b8                      # one tile: no per-step overhead
        else:
            # >= 2 grid steps so v7x's two TensorCores can both take work on
            # the "parallel" batch axis; capped so z/out tiles + the f32 h
            # intermediate stay a few MiB of VMEM.
            block_b = min(_round_up(pl.cdiv(B, 2), 8), 512)
    B_pad = _round_up(B, block_b)

    # --- Lane-dense padding (exact: pads are zeros through matmul/ReLU) -----
    def _pad_to(d):
        return _round_up(d, 256) if d >= 256 else _round_up(d, 128)

    Din = Dz + N
    Din_pad = _pad_to(Din)
    H_pad = _pad_to(H)
    Dout_pad = _pad_to(Dout)

    # --- Layer-1 prefold (one-off, tiny, done in XLA outside the kernel) ----
    #   cat([z, emb(x)]) @ W1 + b1
    #     == cat([z, onehot(x)]) @ cat([W1[:Dz], emb_tbl @ W1[Dz:] + b1], 0)
    # (each valid one-hot row sums to exactly 1, so b1 folds into those rows).
    w_cond = emb_tbl.astype(f32) @ w1[Dz:].astype(f32) + b1.astype(f32)[None, :]
    w_cat = jnp.concatenate([w1[:Dz].astype(f32), w_cond], axis=0)       # (Din, H)
    w_cat_p = jnp.pad(w_cat, ((0, Din_pad - Din),
                              (0, H_pad - H))).astype(compute_dtype)
    w2_p = jnp.pad(w2, ((0, H_pad - H),
                        (0, Dout_pad - Dout))).astype(compute_dtype)
    b2_p = jnp.pad(b2.reshape(1, Dout).astype(f32),
                   ((0, 0), (0, Dout_pad - Dout)))

    # x_cat = [z | onehot(x_cond)], batch- and lane-padded.
    # nn.Embedding would raise on out-of-range indices; clamp instead of
    # silently dropping the embedding contribution.
    idx = jnp.clip(x_cond.astype(jnp.int32), 0, N - 1)
    onehot = (idx[:, None] == jnp.arange(N, dtype=jnp.int32)[None, :])
    x_cat = jnp.concatenate([z.astype(f32), onehot.astype(f32)], axis=1)  # (B, Din)
    x_cat_p = jnp.pad(x_cat, ((0, B_pad - B),
                              (0, Din_pad - Din))).astype(compute_dtype)

    # --- VMEM budget (double-buffered operands + f32 h intermediate) --------
    itb = jnp.dtype(compute_dtype).itemsize
    est = (2 * (Din_pad * H_pad + H_pad * Dout_pad) * itb      # weights
           + 2 * block_b * (Din_pad * itb + Dout_pad * 4)      # x / out tiles
           + block_b * H_pad * 4                               # f32 h
           + 2 * Dout_pad * 4 + (4 << 20))                     # b2 + slack
    vmem_limit = int(min(max(2 * est, 32 << 20), 64 << 20))

    grid = (B_pad // block_b,)
    const = lambda shape: pl.BlockSpec(shape, lambda i: (0, 0))  # grid-invariant

    out = pl.pallas_call(
        _cond_decoder_kernel,
        out_shape=jax.ShapeDtypeStruct((B_pad, Dout_pad), out_dtype),
        grid_spec=pltpu.PrefetchScalarGridSpec(
            num_scalar_prefetch=0,
            grid=grid,
            in_specs=[
                pl.BlockSpec((block_b, Din_pad), lambda i: (i, 0)),  # [z | onehot]
                const((Din_pad, H_pad)),                             # W_cat (b1 folded)
                const((H_pad, Dout_pad)),                            # W2
                const((1, Dout_pad)),                                # b2
            ],
            out_specs=pl.BlockSpec((block_b, Dout_pad), lambda i: (i, 0)),
        ),
        compiler_params=pltpu.CompilerParams(
            dimension_semantics=("parallel",),
            vmem_limit_bytes=vmem_limit),
    )(x_cat_p, w_cat_p, w2_p, b2_p)

    return out[:B, :Dout]


def _reference(z, x_cond, params):
    """Pure-JAX reference mirroring the PyTorch forward exactly."""
    emb = params["emb"][x_cond]                       # nn.Embedding lookup
    h = jnp.concatenate([z, emb], axis=1)             # torch.cat(..., dim=1)
    h = jnp.maximum(h @ params["w1"] + params["b1"], 0.0)
    return h @ params["w2"] + params["b2"]


def _init_params(key, num_conditions, cond_embed_dim, latent_dim, hidden_dim,
                 out_dim):
    ks = jax.random.split(key, 5)
    return {
        # nn.Embedding(num_conditions, condition_embed_dim).weight ~ N(0, 1)
        "emb": jax.random.normal(ks[0], (num_conditions, cond_embed_dim),
                                 jnp.float32),
        # synthetic decoder MLP weights, stored [in, out]
        "w1": 0.1 * jax.random.normal(ks[1],
                                      (latent_dim + cond_embed_dim, hidden_dim),
                                      jnp.float32),
        "b1": 0.1 * jax.random.normal(ks[2], (hidden_dim,), jnp.float32),
        "w2": 0.1 * jax.random.normal(ks[3], (hidden_dim, out_dim),
                                      jnp.float32),
        "b2": 0.1 * jax.random.normal(ks[4], (out_dim,), jnp.float32),
    }


if __name__ == "__main__":
    # TODO(synk): the wrapped `decoder` is unspecified in the PyTorch module;
    # it is synthesized here as Linear->ReLU->Linear (typical CFVAE head).
    B, Dz, De, N, H, Dout = 16, 32, 16, 10, 64, 48

    key = jax.random.PRNGKey(0)
    kz, kc, kp = jax.random.split(key, 3)
    z = jax.random.normal(kz, (B, Dz), jnp.float32)
    x_cond = jax.random.randint(kc, (B,), 0, N, jnp.int32)
    params = _init_params(kp, N, De, Dz, H, Dout)

    ref = _reference(z, x_cond, params)

    # Default fast path: bf16 operands, f32 accumulation (looser tolerance).
    out_bf16 = jax.block_until_ready(conditional_decoder(z, x_cond, params))
    assert out_bf16.shape == (B, Dout)
    assert jnp.allclose(out_bf16, ref, atol=1e-1, rtol=5e-2), "bf16 mismatch"

    # f32 operand path for a bit-tight check against the reference.
    out_f32 = jax.block_until_ready(
        conditional_decoder(z, x_cond, params, compute_dtype=jnp.float32))
    assert out_f32.shape == (B, Dout)
    assert jnp.allclose(out_f32, ref, atol=1e-4, rtol=1e-4), "f32 mismatch"

    print("KERNEL_OK")
</pallas_src>

<mosaic_0001>
module attributes {stable_mosaic.version = 11 : i64} {
  func.func @_cond_decoder_kernel(%arg0: i32, %arg1: memref<16x128xbf16, #tpu.memory_space<vmem>>, %arg2: memref<128x128xbf16, #tpu.memory_space<vmem>>, %arg3: memref<128x128xbf16, #tpu.memory_space<vmem>>, %arg4: memref<1x128xf32, #tpu.memory_space<vmem>>, %arg5: memref<16x128xf32, #tpu.memory_space<vmem>>) attributes {dimension_semantics = [#tpu.dimension_semantics<parallel>], iteration_bounds = array<i64: 1>, scalar_prefetch = 0 : i64, scratch_operands = 0 : i64, tpu.core_type = #tpu.core_type<tc>, window_params = [{transform_indices = @transform_0, window_bounds = array<i64: 16, 128>}, {pipeline_mode = #tpu.pipeline_mode<synchronous>, transform_indices = @transform_1, window_bounds = array<i64: 128, 128>}, {pipeline_mode = #tpu.pipeline_mode<synchronous>, transform_indices = @transform_2, window_bounds = array<i64: 128, 128>}, {pipeline_mode = #tpu.pipeline_mode<synchronous>, transform_indices = @transform_3, window_bounds = array<i64: 1, 128>}, {transform_indices = @transform_4, window_bounds = array<i64: 16, 128>}]} {
    %c0 = arith.constant 0 : index
    %c0_0 = arith.constant 0 : index
    %0 = vector.load %arg1[%c0, %c0_0] : memref<16x128xbf16, #tpu.memory_space<vmem>>, vector<16x128xbf16>
    %c0_1 = arith.constant 0 : index
    %c0_2 = arith.constant 0 : index
    %1 = vector.load %arg2[%c0_1, %c0_2] : memref<128x128xbf16, #tpu.memory_space<vmem>>, vector<128x128xbf16>
    %cst = arith.constant dense<0.000000e+00> : vector<16x128xf32>
    %2 = tpu.matmul %0, %1, %cst {dimension_numbers = #tpu.dot_dimension_numbers<[1], [0], [0], [1], [0, 0, 1, 1], [], []>} : vector<16x128xbf16>, vector<128x128xbf16>, vector<16x128xf32> -> vector<16x128xf32>
    %cst_3 = arith.constant 0.000000e+00 : f32
    %3 = vector.broadcast %cst_3 : f32 to vector<16x128xf32>
    %4 = arith.maximumf %2, %3 : vector<16x128xf32>
    %5 = arith.truncf %4 : vector<16x128xf32> to vector<16x128xbf16>
    %c0_4 = arith.constant 0 : index
    %c0_5 = arith.constant 0 : index
    %6 = vector.load %arg3[%c0_4, %c0_5] : memref<128x128xbf16, #tpu.memory_space<vmem>>, vector<128x128xbf16>
    %cst_6 = arith.constant dense<0.000000e+00> : vector<16x128xf32>
    %7 = tpu.matmul %5, %6, %cst_6 {dimension_numbers = #tpu.dot_dimension_numbers<[1], [0], [0], [1], [0, 0, 1, 1], [], []>} : vector<16x128xbf16>, vector<128x128xbf16>, vector<16x128xf32> -> vector<16x128xf32>
    %c0_7 = arith.constant 0 : index
    %c0_8 = arith.constant 0 : index
    %8 = vector.load %arg4[%c0_7, %c0_8] : memref<1x128xf32, #tpu.memory_space<vmem>>, vector<1x128xf32>
    %9 = vector.broadcast %8 : vector<1x128xf32> to vector<16x128xf32>
    %10 = arith.addf %7, %9 : vector<16x128xf32>
    %c0_9 = arith.constant 0 : index
    %c0_10 = arith.constant 0 : index
    %11 = vector.load %arg5[%c0_9, %c0_10] : memref<16x128xf32, #tpu.memory_space<vmem>>, vector<16x128xf32>
    tpu.vector_store %arg5[%c0_9, %c0_10], %10 {strides = array<i32>} : memref<16x128xf32, #tpu.memory_space<vmem>>, vector<16x128xf32>,
    return
  }
  func.func @transform_0(%arg0: i32) -> (i32, i32) {
    %c0_i32 = arith.constant 0 : i32
    %c0_i32_0 = arith.constant 0 : i32
    return %arg0, %c0_i32 : i32, i32
  }
  func.func @transform_1(%arg0: i32) -> (i32, i32) {
    %c0_i32 = arith.constant 0 : i32
    %c0_i32_0 = arith.constant 0 : i32
    %c0_i32_1 = arith.constant 0 : i32
    return %c0_i32, %c0_i32_0 : i32, i32
  }
  func.func @transform_2(%arg0: i32) -> (i32, i32) {
    %c0_i32 = arith.constant 0 : i32
    %c0_i32_0 = arith.constant 0 : i32
    %c0_i32_1 = arith.constant 0 : i32
    return %c0_i32, %c0_i32_0 : i32, i32
  }
  func.func @transform_3(%arg0: i32) -> (i32, i32) {
    %c0_i32 = arith.constant 0 : i32
    %c0_i32_0 = arith.constant 0 : i32
    %c0_i32_1 = arith.constant 0 : i32
    return %c0_i32, %c0_i32_0 : i32, i32
  }
  func.func @transform_4(%arg0: i32) -> (i32, i32) {
    %c0_i32 = arith.constant 0 : i32
    %c0_i32_0 = arith.constant 0 : i32
    return %arg0, %c0_i32 : i32, i32
  }
}

</mosaic_0001>

<llo_original>
// kernel: conditional_decoder.1
$region0: #{conditional_decoder.1}
  #allocation0 [shape = 'u32[]', space=smem, size = 0x4, offset = 0x4, fixed_abs, tag = 'smem constant byte address 0x4 - core index']
  #allocation1 [shape = 'u32[144,128]{1,0:T(1,128)}', space=vmem, size = 0x12000, scoped, tag = 'internal scratch']
  %s0 = inlined_call_operand.vmem [shape: bf16[16,128], index: 0, kind: input, shape index: {}]
  %s1 = inlined_call_operand.vmem [shape: bf16[128,128], index: 1, kind: input, shape index: {}]
  %s2 = inlined_call_operand.vmem [shape: bf16[128,128], index: 2, kind: input, shape index: {}]
  %s3 = inlined_call_operand.vmem [shape: f32[1,128], index: 3, kind: input, shape index: {}]
  %s4 = inlined_call_operand.hbm [shape: f32[16,128], index: 4, kind: output, shape index: {}]
  %s5 = sld [smem:[#allocation0]]
  $region26: #{conditional_decoder.1} parent=0
    _
  %s7 = ssub.s32 1, %s5
  %s8 = scalar_select 0, %s7, %s5
  $region1: #{conditional_decoder.1} parent=0
    #allocation2 [shape = 'u8[8192]{0}', space=vmem, size = 0x2000, scoped, tag = 'output window, operand 0, single buffered']
    #allocation3 [shape = 's32[1]{0}', space=sflag, size = 0x4, scoped, tag = 'scoped memory for conditional_decoder.1']
    %9 = vsyncpa [#allocation3], 0
    // Predicated region
    $region2: #{conditional_decoder.1} parent=1 // pred_check
      _
    $region3: #{conditional_decoder.1} parent=1 // pred_check_branch
      %11 = sbr.rel (0) target = $region5
    $region4: #{conditional_decoder.1} parent=1 // pred_region
      _
    $region5: #{conditional_decoder.1} parent=1 // pred_fallthru
      _
    // Predicated region
    $region6: #{conditional_decoder.1} parent=1 // pred_check
      _
    $region7: #{conditional_decoder.1} parent=1 // pred_check_branch
      %13 = sbr.rel (0) target = $region9
    $region8: #{conditional_decoder.1} parent=1 // pred_region
      _
    $region9: #{conditional_decoder.1} parent=1 // pred_fallthru
      _
    // Predicated region
    $region10: #{conditional_decoder.1} parent=1 // pred_check
      _
    $region11: #{conditional_decoder.1} parent=1 // pred_check_branch
      %15 = sbr.rel (0) target = $region13
    $region12: #{conditional_decoder.1} parent=1 // pred_region
      _
    $region13: #{conditional_decoder.1} parent=1 // pred_fallthru
      _
    // Predicated region
    $region14: #{conditional_decoder.1} parent=1 // pred_check
      _
    $region15: #{conditional_decoder.1} parent=1 // pred_check_branch
      %17 = sbr.rel (0) target = $region17
    $region16: #{conditional_decoder.1} parent=1 // pred_region
      _
    $region17: #{conditional_decoder.1} parent=1 // pred_fallthru
      _
    %v19 = vld [vmem:[%s0] sm:$0xf]
    %v20 = vld [vmem:[%s0 + $0x4] sm:$0xf]
    %v21 = vld [vmem:[%s1] sm:$0xf]
    %v22 = vld [vmem:[%s1 + $0x4] sm:$0xf]
    %v23 = vld [vmem:[%s1 + $0x8] sm:$0xf]
    %v24 = vld [vmem:[%s1 + $0xc] sm:$0xf]
    %v25 = vld [vmem:[%s1 + $0x10] sm:$0xf]
    %v26 = vld [vmem:[%s1 + $0x14] sm:$0xf]
    %v27 = vld [vmem:[%s1 + $0x18] sm:$0xf]
    %v28 = vld [vmem:[%s1 + $0x1c] sm:$0xf]
    %v29 = vld [vmem:[%s1 + $0x20] sm:$0xf]
    %v30 = vld [vmem:[%s1 + $0x24] sm:$0xf]
    %v31 = vld [vmem:[%s1 + $0x28] sm:$0xf]
    %v32 = vld [vmem:[%s1 + $0x2c] sm:$0xf]
    %v33 = vld [vmem:[%s1 + $0x30] sm:$0xf]
    %v34 = vld [vmem:[%s1 + $0x34] sm:$0xf]
    %v35 = vld [vmem:[%s1 + $0x38] sm:$0xf]
    %v36 = vld [vmem:[%s1 + $0x3c] sm:$0xf]
    %v39 = vunpack.c.l.b16 %v19
    %v40 = vunpack.c.l.b16 %v20
    %v41 = vpack.c.b16 %v40, %v39
    %v59 = vunpack.c.l.b16 %v21
    %v60 = vunpack.c.l.b16 %v22
    %v61 = vunpack.c.l.b16 %v23
    %v62 = vunpack.c.l.b16 %v24
    %v63 = vunpack.c.l.b16 %v25
    %v64 = vunpack.c.l.b16 %v26
    %v65 = vunpack.c.l.b16 %v27
    %v66 = vunpack.c.l.b16 %v28
    %v67 = vunpack.c.l.b16 %v29
    %v68 = vunpack.c.l.b16 %v30
    %v69 = vunpack.c.l.b16 %v31
    %v70 = vunpack.c.l.b16 %v32
    %v71 = vunpack.c.l.b16 %v33
    %v72 = vunpack.c.l.b16 %v34
    %v73 = vunpack.c.l.b16 %v35
    %v74 = vunpack.c.l.b16 %v36
    %v75 = vpack.c.b16 %v60, %v59
    %v76 = vpack.c.b16 %v62, %v61
    %v77 = vpack.c.b16 %v64, %v63
    %v78 = vpack.c.b16 %v66, %v65
    %v79 = vpack.c.b16 %v68, %v67
    %v80 = vpack.c.b16 %v70, %v69
    %v81 = vpack.c.b16 %v72, %v71
    %v82 = vpack.c.b16 %v74, %v73
    %91 = vmatprep.subr.bf16.mxu0 0
    %92 = vmatpush1.bf16.msra.mxu0 %v82
    %93 = vmatprep.subr.bf16.mxu0 0
    %94 = vmatpush1.bf16.msra.mxu0 %v81
    %95 = vmatprep.subr.bf16.mxu0 0
    %96 = vmatpush1.bf16.msra.mxu0 %v80
    %97 = vmatprep.subr.bf16.mxu0 0
    %98 = vmatpush1.bf16.msra.mxu0 %v79
    %99 = vmatprep.subr.bf16.mxu0 0
    %100 = vmatpush1.bf16.msra.mxu0 %v78
    %101 = vmatprep.subr.bf16.mxu0 0
    %102 = vmatpush1.bf16.msra.mxu0 %v77
    %103 = vmatprep.subr.bf16.mxu0 0
    %104 = vmatpush1.bf16.msra.mxu0 %v76
    %105 = vmatprep.subr.bf16.mxu0 0
    %106 = vmatpush1.bf16.msra.mxu0 %v75
    %107 = vmatprep.subr.bf16.mxu0 0
    %108 = vmatpush2.bf16.msra.mxu0 0
    %109 = vmatprep.subr.bf16.mxu0 0
    %110 = vmatpush2.bf16.msra.mxu0 0
    %111 = vmatprep.subr.bf16.mxu0 0
    %112 = vmatpush2.bf16.msra.mxu0 0
    %113 = vmatprep.subr.bf16.mxu0 0
    %114 = vmatpush2.bf16.msra.mxu0 0
    %115 = vmatprep.subr.bf16.mxu0 0
    %116 = vmatpush2.bf16.msra.mxu0 0
    %117 = vmatprep.subr.bf16.mxu0 0
    %118 = vmatpush2.bf16.msra.mxu0 0
    %119 = vmatprep.subr.bf16.mxu0 0
    %120 = vmatpush2.bf16.msra.mxu0 0
    %121 = vmatprep.subr.bf16.mxu0 0
    %122 = vmatpush2.bf16.msra.mxu0 0
    %123 = vmatprep.mubr.bf16.mxu0 0
    %124 = vmatmul.mubr.bf16.gmra.mxu0 %v41
    %v125 = vpop.f32.mrf.mxu0
    %v126 = vadd.f32 0.0, %v125
    %v127 = vpop.f32.mrf.mxu0
    %v128 = vpop.f32.mrf.mxu0
    %v129 = vadd.f32 0.0, %v128
    %v130 = vpop.f32.mrf.mxu0
    %131 = vdwg.mxu0
    %v132 = vmax.f32 %v126, 0.0
    %v133 = vmax.f32 %v129, 0.0
    %v134 = vpack.c.bf16 %v133, %v132
    %v135 = vld [vmem:[%s2] sm:$0xf]
    %v136 = vld [vmem:[%s2 + $0x4] sm:$0xf]
    %v137 = vld [vmem:[%s2 + $0x8] sm:$0xf]
    %v138 = vld [vmem:[%s2 + $0xc] sm:$0xf]
    %v139 = vld [vmem:[%s2 + $0x10] sm:$0xf]
    %v140 = vld [vmem:[%s2 + $0x14] sm:$0xf]
    %v141 = vld [vmem:[%s2 + $0x18] sm:$0xf]
    %v142 = vld [vmem:[%s2 + $0x1c] sm:$0xf]
    %v143 = vld [vmem:[%s2 + $0x20] sm:$0xf]
    %v144 = vld [vmem:[%s2 + $0x24] sm:$0xf]
    %v145 = vld [vmem:[%s2 + $0x28] sm:$0xf]
    %v146 = vld [vmem:[%s2 + $0x2c] sm:$0xf]
    %v147 = vld [vmem:[%s2 + $0x30] sm:$0xf]
    %v148 = vld [vmem:[%s2 + $0x34] sm:$0xf]
    %v149 = vld [vmem:[%s2 + $0x38] sm:$0xf]
    %v150 = vld [vmem:[%s2 + $0x3c] sm:$0xf]
    %v151 = vld [vmem:[%s3] sm:$0x1]
    %v153 = vlaneseq
    %v154 = vshrl.u32 %v153, 7
    %v155 = vsub.s32 0, %v154
    %v156 = vrot.slane %v151, %v155
    %v174 = vunpack.c.l.b16 %v135
    %v175 = vunpack.c.l.b16 %v136
    %v176 = vunpack.c.l.b16 %v137
    %v177 = vunpack.c.l.b16 %v138
    %v178 = vunpack.c.l.b16 %v139
    %v179 = vunpack.c.l.b16 %v140
    %v180 = vunpack.c.l.b16 %v141
    %v181 = vunpack.c.l.b16 %v142
    %v182 = vunpack.c.l.b16 %v143
    %v183 = vunpack.c.l.b16 %v144
    %v184 = vunpack.c.l.b16 %v145
    %v185 = vunpack.c.l.b16 %v146
    %v186 = vunpack.c.l.b16 %v147
    %v187 = vunpack.c.l.b16 %v148
    %v188 = vunpack.c.l.b16 %v149
    %v189 = vunpack.c.l.b16 %v150
    %v190 = vpack.c.b16 %v175, %v174
    %v191 = vpack.c.b16 %v177, %v176
    %v192 = vpack.c.b16 %v179, %v178
    %v193 = vpack.c.b16 %v181, %v180
    %v194 = vpack.c.b16 %v183, %v182
    %v195 = vpack.c.b16 %v185, %v184
    %v196 = vpack.c.b16 %v187, %v186
    %v197 = vpack.c.b16 %v189, %v188
    %206 = vmatprep.subr.bf16.mxu0 0
    %207 = vmatpush1.bf16.msra.mxu0 %v197
    %208 = vmatprep.subr.bf16.mxu0 0
    %209 = vmatpush1.bf16.msra.mxu0 %v196
    %210 = vmatprep.subr.bf16.mxu0 0
    %211 = vmatpush1.bf16.msra.mxu0 %v195
    %212 = vmatprep.subr.bf16.mxu0 0
    %213 = vmatpush1.bf16.msra.mxu0 %v194
    %214 = vmatprep.subr.bf16.mxu0 0
    %215 = vmatpush1.bf16.msra.mxu0 %v193
    %216 = vmatprep.subr.bf16.mxu0 0
    %217 = vmatpush1.bf16.msra.mxu0 %v192
    %218 = vmatprep.subr.bf16.mxu0 0
    %219 = vmatpush1.bf16.msra.mxu0 %v191
    %220 = vmatprep.subr.bf16.mxu0 0
    %221 = vmatpush1.bf16.msra.mxu0 %v190
    %222 = vmatprep.subr.bf16.mxu0 0
    %223 = vmatpush2.bf16.msra.mxu0 0
    %224 = vmatprep.subr.bf16.mxu0 0
    %225 = vmatpush2.bf16.msra.mxu0 0
    %226 = vmatprep.subr.bf16.mxu0 0
    %227 = vmatpush2.bf16.msra.mxu0 0
    %228 = vmatprep.subr.bf16.mxu0 0
    %229 = vmatpush2.bf16.msra.mxu0 0
    %230 = vmatprep.subr.bf16.mxu0 0
    %231 = vmatpush2.bf16.msra.mxu0 0
    %232 = vmatprep.subr.bf16.mxu0 0
    %233 = vmatpush2.bf16.msra.mxu0 0
    %234 = vmatprep.subr.bf16.mxu0 0
    %235 = vmatpush2.bf16.msra.mxu0 0
    %236 = vmatprep.subr.bf16.mxu0 0
    %237 = vmatpush2.bf16.msra.mxu0 0
    %238 = vmatprep.mubr.bf16.mxu0 0
    %239 = vmatmul.mubr.bf16.gmra.mxu0 %v134
    %v240 = vpop.f32.mrf.mxu0
    %v241 = vadd.f32 %v156, %v240
    %v242 = vpop.f32.mrf.mxu0
    %v243 = vpop.f32.mrf.mxu0
    %v244 = vadd.f32 %v156, %v243
    %v245 = vpop.f32.mrf.mxu0
    %246 = vdwg.mxu0
    %247 = vst [vmem:[#allocation2] sm:$0xff] %v241
    %248 = vst [vmem:[#allocation2 + $0x8] sm:$0xff] %v244
    // Predicated region
    $region18: #{conditional_decoder.1} parent=1 // pred_check
      _
    $region19: #{conditional_decoder.1} parent=1 // pred_check_branch
      %250 = sbr.rel (0) target = $region21
    $region20: #{conditional_decoder.1} parent=1 // pred_region
      %s252 = ssub.s32 256, 256
      %253 = vsyncadd [#allocation3], %s252
      %s254 = sshll.u32 [#allocation2], 4
      %s255 = int_to_ptr.vmem [resolvable:$true] %s254
      %260 = dma.vmem_to_hbm [thread:$0]  %s255, 256, %s4, [#allocation3], 128, 128, 8
    $region21: #{conditional_decoder.1} parent=1 // pred_fallthru
      _
    // Predicated region
    $region22: #{conditional_decoder.1} parent=1 // pred_check
      _
    $region23: #{conditional_decoder.1} parent=1 // pred_check_branch
      %262 = sbr.rel (0) target = $region25
    $region24: #{conditional_decoder.1} parent=1 // pred_region
      %263 = dma.done [#allocation3], 256
    $region25: #{conditional_decoder.1} parent=1 // pred_fallthru
      _
    %264 = vsyncpa [#allocation3], 1

</llo_original>
